<compile_context>
chip_gen: v7x
topology: tpu7x:2x2x1
jax: 0.10.0
libtpu: 0.0.40
codegen_flags: <defaults>
</compile_context>

<pallas_src>
import jax
import jax.numpy as jnp
from jax.experimental import pallas as pl
from jax.experimental.pallas import tpu as pltpu


_LANES = 128      # vreg lane width: batch axis lives here
_SUBLANES = 8     # f32 sublane quantum
_MAX_ROWS = 2048  # max 128-lane rows per grid step -> 2 MiB in + 1 MiB out per step


def _round_up(a, b):
    return pl.cdiv(a, b) * b


def _logreg_kernel(x_ref, w_ref, b_ref, o_ref):
    # x_ref: (2, R, 128) f32 VMEM (feature-major, batch dense on sublanes x lanes)
    # w_ref: (1, 2) f32 SMEM, b_ref: (1, 1) f32 SMEM, o_ref: (R, 128) f32 VMEM
    w0 = w_ref[0, 0]          # scalars from SMEM broadcast for free on the VPU
    w1 = w_ref[0, 1]
    b = b_ref[0, 0]
    # logits = x0 * w0 + x1 * w1 + b  (pure VPU elementwise, fully dense vregs)
    z = x_ref[0] * w0 + x_ref[1] * w1 + b
    # sigmoid(z) = 0.5 * tanh(z / 2) + 0.5 : one exact EUP transcendental;
    # the extra mul/add ride in spare VALU slots.
    o_ref[...] = 0.5 * jnp.tanh(0.5 * z) + 0.5


def logistic_regression_forward(x, weight, bias, *, max_rows=_MAX_ROWS):
    """x: (N, 2) f32, weight: (1, 2) f32, bias: (1,) f32 -> (N, 1) f32."""
    n, in_features = x.shape
    assert in_features == 2 and weight.shape == (1, 2) and bias.shape == (1,)

    # Adaptive dense tiling: batch packed as (m_pad, 128) rows of full vregs.
    m = pl.cdiv(n, _LANES)                 # 128-lane rows needed
    m8 = _round_up(m, _SUBLANES)           # round to the f32 sublane quantum
    if m8 > max_rows:
        r_tile = max_rows
    elif m8 > _SUBLANES:
        # Aim for >=2 grid steps so both v7x TensorCores stream (neutral 1-TC).
        r_tile = _round_up(pl.cdiv(m8, 2), _SUBLANES)
    else:
        r_tile = m8
    num_steps = pl.cdiv(m8, r_tile)
    m_pad = num_steps * r_tile
    n_pad = m_pad * _LANES

    # Feature-major, lane-dense layout (2, m_pad, 128).  Minimal adaptive padding;
    # the reshape is a free row-major reshape.  (Ideally produced upstream.)
    x_fm = jnp.pad(x.T, ((0, 0), (0, n_pad - n))).reshape(2, m_pad, _LANES)
    b2d = bias.reshape(1, 1)               # (1, 1) scalar for SMEM

    out = pl.pallas_call(
        _logreg_kernel,
        out_shape=jax.ShapeDtypeStruct((m_pad, _LANES), jnp.float32),
        grid_spec=pltpu.PrefetchScalarGridSpec(
            num_scalar_prefetch=0,
            grid=(num_steps,),
            in_specs=[
                # Streamed dense (2, R, 128) tile of the feature-major input.
                pl.BlockSpec((2, r_tile, _LANES), lambda i: (0, i, 0)),
                # Tiny weight / bias live whole in SMEM; read as scalars.
                pl.BlockSpec(memory_space=pltpu.MemorySpace.SMEM),
                pl.BlockSpec(memory_space=pltpu.MemorySpace.SMEM),
            ],
            out_specs=pl.BlockSpec((r_tile, _LANES), lambda i: (i, 0)),
        ),
        compiler_params=pltpu.CompilerParams(
            # Independent batch tiles -> shard across both v7x TensorCores.
            dimension_semantics=("parallel",),
        ),
        cost_estimate=pl.CostEstimate(
            flops=6 * n_pad,
            transcendentals=n_pad,
            bytes_accessed=12 * n_pad,
        ),
    )(x_fm, weight, b2d)

    # Back to the PyTorch (N, 1) layout (row-major reshape + slice, no compute).
    return out.reshape(-1)[:n].reshape(n, 1)


if __name__ == "__main__":
    key = jax.random.PRNGKey(0)
    k_x, k_w, k_b = jax.random.split(key, 3)

    # Small deterministic inputs consistent with Linear(2, 1): batch=8, features=2.
    batch = 8
    x = jax.random.normal(k_x, (batch, 2), dtype=jnp.float32)

    # Deterministic parameter init (mimics nn.Linear's uniform(-1/sqrt(2), 1/sqrt(2))).
    bound = 1.0 / jnp.sqrt(2.0)
    weight = jax.random.uniform(k_w, (1, 2), minval=-bound, maxval=bound, dtype=jnp.float32)
    bias = jax.random.uniform(k_b, (1,), minval=-bound, maxval=bound, dtype=jnp.float32)

    y_pred = jax.block_until_ready(logistic_regression_forward(x, weight, bias))

    # Reference check in plain JAX (kernel uses exact tanh-based sigmoid).
    y_ref = jax.nn.sigmoid(x @ weight.T + bias)
    assert y_pred.shape == (batch, 1)
    assert jnp.allclose(y_pred, y_ref, atol=1e-4, rtol=1e-4), "mismatch vs reference"

    print("KERNEL_OK")
</pallas_src>

<mosaic_0001>
module attributes {stable_mosaic.version = 11 : i64} {
  func.func @_logreg_kernel(%arg0: i32, %arg1: memref<2x8x128xf32, #tpu.memory_space<vmem>>, %arg2: memref<1x2xf32, #tpu.memory_space<smem>>, %arg3: memref<1x1xf32, #tpu.memory_space<smem>>, %arg4: memref<8x128xf32, #tpu.memory_space<vmem>>) attributes {dimension_semantics = [#tpu.dimension_semantics<parallel>], iteration_bounds = array<i64: 1>, scalar_prefetch = 0 : i64, scratch_operands = 0 : i64, tpu.core_type = #tpu.core_type<tc>, window_params = [{transform_indices = @transform_0, window_bounds = array<i64: 2, 8, 128>}, {transform_indices = @transform_1, window_bounds = array<i64: 1, 2>}, {transform_indices = @transform_2, window_bounds = array<i64: 1, 1>}, {transform_indices = @transform_3, window_bounds = array<i64: 8, 128>}]} {
    %c0 = arith.constant 0 : index
    %c0_0 = arith.constant 0 : index
    %0 = memref.load %arg2[%c0, %c0_0] : memref<1x2xf32, #tpu.memory_space<smem>>
    %c0_1 = arith.constant 0 : index
    %c1 = arith.constant 1 : index
    %1 = memref.load %arg2[%c0_1, %c1] : memref<1x2xf32, #tpu.memory_space<smem>>
    %c0_2 = arith.constant 0 : index
    %c0_3 = arith.constant 0 : index
    %2 = memref.load %arg3[%c0_2, %c0_3] : memref<1x1xf32, #tpu.memory_space<smem>>
    %c0_4 = arith.constant 0 : index
    %c0_5 = arith.constant 0 : index
    %c0_6 = arith.constant 0 : index
    %3 = vector.load %arg1[%c0_4, %c0_5, %c0_6] : memref<2x8x128xf32, #tpu.memory_space<vmem>>, vector<1x8x128xf32>
    %4 = vector.shape_cast %3 : vector<1x8x128xf32> to vector<8x128xf32>
    %5 = vector.broadcast %0 : f32 to vector<8x128xf32>
    %6 = arith.mulf %4, %5 : vector<8x128xf32>
    %c1_7 = arith.constant 1 : index
    %c0_8 = arith.constant 0 : index
    %c0_9 = arith.constant 0 : index
    %7 = vector.load %arg1[%c1_7, %c0_8, %c0_9] : memref<2x8x128xf32, #tpu.memory_space<vmem>>, vector<1x8x128xf32>
    %8 = vector.shape_cast %7 : vector<1x8x128xf32> to vector<8x128xf32>
    %9 = vector.broadcast %1 : f32 to vector<8x128xf32>
    %10 = arith.mulf %8, %9 : vector<8x128xf32>
    %11 = arith.addf %6, %10 : vector<8x128xf32>
    %12 = vector.broadcast %2 : f32 to vector<8x128xf32>
    %13 = arith.addf %11, %12 : vector<8x128xf32>
    %cst = arith.constant 5.000000e-01 : f32
    %14 = vector.broadcast %cst : f32 to vector<8x128xf32>
    %15 = arith.mulf %14, %13 : vector<8x128xf32>
    %16 = math.tanh %15 : vector<8x128xf32>
    %cst_10 = arith.constant 5.000000e-01 : f32
    %17 = vector.broadcast %cst_10 : f32 to vector<8x128xf32>
    %18 = arith.mulf %17, %16 : vector<8x128xf32>
    %cst_11 = arith.constant 5.000000e-01 : f32
    %19 = vector.broadcast %cst_11 : f32 to vector<8x128xf32>
    %20 = arith.addf %18, %19 : vector<8x128xf32>
    %c0_12 = arith.constant 0 : index
    %c0_13 = arith.constant 0 : index
    %21 = vector.load %arg4[%c0_12, %c0_13] : memref<8x128xf32, #tpu.memory_space<vmem>>, vector<8x128xf32>
    tpu.vector_store %arg4[%c0_12, %c0_13], %20 {strides = array<i32>} : memref<8x128xf32, #tpu.memory_space<vmem>>, vector<8x128xf32>,
    return
  }
  func.func @transform_0(%arg0: i32) -> (i32, i32, i32) {
    %c0_i32 = arith.constant 0 : i32
    %c0_i32_0 = arith.constant 0 : i32
    %c0_i32_1 = arith.constant 0 : i32
    return %c0_i32, %arg0, %c0_i32_0 : i32, i32, i32
  }
  func.func @transform_1(%arg0: i32) -> (i32, i32) {
    %c0_i32 = arith.constant 0 : i32
    %c0_i32_0 = arith.constant 0 : i32
    %c0_i32_1 = arith.constant 0 : i32
    return %c0_i32, %c0_i32_0 : i32, i32
  }
  func.func @transform_2(%arg0: i32) -> (i32, i32) {
    %c0_i32 = arith.constant 0 : i32
    %c0_i32_0 = arith.constant 0 : i32
    %c0_i32_1 = arith.constant 0 : i32
    return %c0_i32, %c0_i32_0 : i32, i32
  }
  func.func @transform_3(%arg0: i32) -> (i32, i32) {
    %c0_i32 = arith.constant 0 : i32
    %c0_i32_0 = arith.constant 0 : i32
    return %arg0, %c0_i32 : i32, i32
  }
}

</mosaic_0001>

<llo_original>
// kernel: tpu_custom_call.1
$region0: #{tpu_custom_call.1}
  #allocation0 [shape = 'u32[]', space=smem, size = 0x4, offset = 0x4, fixed_abs, tag = 'smem constant byte address 0x4 - core index']
  #allocation1 [shape = 'u32[144,128]{1,0:T(1,128)}', space=vmem, size = 0x12000, scoped, tag = 'internal scratch']
  #allocation2 [shape = 'f32[1,1]{1,0:T(1,128)S(6)}', space=smem, size = 0x200, scoped, tag = 'scoped memory for tpu_custom_call.1']
  %s0 = inlined_call_operand.hbm [shape: f32[2,8,128], index: 0, kind: input, shape index: {}]
  %s1 = inlined_call_operand.vmem [shape: f32[1,2], index: 1, kind: input, shape index: {}]
  %s2 = inlined_call_operand.<no memory space> [shape: f32[1,1], index: 2, kind: input, shape index: {}]
  %s3 = inlined_call_operand.hbm [shape: f32[8,128], index: 3, kind: output, shape index: {}]
  %s4 = sld [smem:[#allocation0]]
  $region30: #{tpu_custom_call.1} parent=0
    _
  %s6 = ssub.s32 1, %s4
  %s7 = scalar_select 0, %s6, %s4
  %8 = sst [smem:[#allocation2]] %s2
  $region1: #{tpu_custom_call.1} parent=0
    #allocation3 [shape = 'u8[8192]{0}', space=vmem, size = 0x2000, scoped, tag = 'input window, operand 0, single buffered']
    #allocation4 [shape = 's32[1]{0}', space=sflag, size = 0x4, scoped, tag = 'scoped memory for tpu_custom_call.1']
    #allocation5 [shape = 's32[1]{0}', space=sflag, size = 0x4, scoped, tag = 'scoped memory for tpu_custom_call.1']
    #allocation6 [shape = 's32[1]{0}', space=sflag, size = 0x4, scoped, tag = 'scoped memory for tpu_custom_call.1']
    #allocation7 [shape = 'u8[512]{0}', space=smem, size = 0x200, scoped, tag = 'input window, operand 1, single buffered']
    #allocation8 [shape = 'u8[4096]{0}', space=vmem, size = 0x1000, scoped, tag = 'output window, operand 0, single buffered']
    %9 = vsyncpa [#allocation4], 0
    %10 = vsyncpa [#allocation6], 0
    %11 = vsyncpa [#allocation5], 0
    // Predicated region
    $region2: #{tpu_custom_call.1} parent=1 // pred_check
      _
    $region3: #{tpu_custom_call.1} parent=1 // pred_check_branch
      %13 = sbr.rel (0) target = $region5
    $region4: #{tpu_custom_call.1} parent=1 // pred_region
      %s15 = ssub.s32 256, 256
      %16 = vsyncadd [#allocation4], %s15
      %s17 = sshll.u32 [#allocation3], 4
      %s18 = int_to_ptr.vmem [resolvable:$true] %s17
      %23 = dma.hbm_to_vmem [thread:$0]  %s0, 256, %s18, [#allocation4], 128, 128, 8
    $region5: #{tpu_custom_call.1} parent=1 // pred_fallthru
      _
    // Predicated region
    $region6: #{tpu_custom_call.1} parent=1 // pred_check
      _
    $region7: #{tpu_custom_call.1} parent=1 // pred_check_branch
      %25 = sbr.rel (0) target = $region9
    $region8: #{tpu_custom_call.1} parent=1 // pred_region
      %s27 = ssub.s32 16, 16
      %28 = vsyncadd [#allocation6], %s27
      %s30 = sshll.u32 %s1, 4
      %s31 = int_to_ptr.vmem [resolvable:$true] %s30
      %33 = dma.vmem_to_smem %s31, 16, [#allocation7], [#allocation6]
    $region9: #{tpu_custom_call.1} parent=1 // pred_fallthru
      _
    // Predicated region
    $region10: #{tpu_custom_call.1} parent=1 // pred_check
      _
    $region11: #{tpu_custom_call.1} parent=1 // pred_check_branch
      %35 = sbr.rel (0) target = $region13
    $region12: #{tpu_custom_call.1} parent=1 // pred_region
      _
    $region13: #{tpu_custom_call.1} parent=1 // pred_fallthru
      _
    // Predicated region
    $region14: #{tpu_custom_call.1} parent=1 // pred_check
      _
    $region15: #{tpu_custom_call.1} parent=1 // pred_check_branch
      %37 = sbr.rel (0) target = $region17
    $region16: #{tpu_custom_call.1} parent=1 // pred_region
      %38 = dma.done [#allocation4], 256
    $region17: #{tpu_custom_call.1} parent=1 // pred_fallthru
      _
    // Predicated region
    $region18: #{tpu_custom_call.1} parent=1 // pred_check
      _
    $region19: #{tpu_custom_call.1} parent=1 // pred_check_branch
      %40 = sbr.rel (0) target = $region21
    $region20: #{tpu_custom_call.1} parent=1 // pred_region
      %41 = dma.done [#allocation6], 16
    $region21: #{tpu_custom_call.1} parent=1 // pred_fallthru
      _
    %42 = sfence
    %s43 = sld [smem:[#allocation7]]
    %s44 = sld [smem:[#allocation7 + $0x1]]
    %s45 = sld [smem:[#allocation2]]
    %v46 = vld [vmem:[#allocation3] sm:$0xff]
    %v47 = vstv %s43
    %v48 = vmul.f32 %v46, %v47
    %s49 = scalar_lea.vmem [#allocation3], 8
    %v50 = vld [vmem:[%s49] sm:$0xff]
    %v51 = vstv %s44
    %v52 = vmul.f32 %v50, %v51
    %v53 = vadd.f32 %v48, %v52
    %v54 = vstv %s45
    %v55 = vadd.f32 %v53, %v54
    %v56 = vmul.f32 %v55, 0.5
    %v57 = vtanh.pop %v56
    %v58 = vmul.f32 %v57, 0.5
    %v59 = vadd.f32 %v58, 0.5
    %60 = vst [vmem:[#allocation8] sm:$0xff] %v59
    // Predicated region
    $region22: #{tpu_custom_call.1} parent=1 // pred_check
      _
    $region23: #{tpu_custom_call.1} parent=1 // pred_check_branch
      %62 = sbr.rel (0) target = $region25
    $region24: #{tpu_custom_call.1} parent=1 // pred_region
      %s64 = ssub.s32 128, 128
      %65 = vsyncadd [#allocation5], %s64
      %s67 = sshll.u32 [#allocation8], 4
      %s68 = int_to_ptr.vmem [resolvable:$true] %s67
      %70 = dma.vmem_to_hbm [thread:$0]  %s68, 128, %s3, [#allocation5]
    $region25: #{tpu_custom_call.1} parent=1 // pred_fallthru
      _
    // Predicated region
    $region26: #{tpu_custom_call.1} parent=1 // pred_check
      _
    $region27: #{tpu_custom_call.1} parent=1 // pred_check_branch
      %72 = sbr.rel (0) target = $region29
    $region28: #{tpu_custom_call.1} parent=1 // pred_region
      %73 = dma.done [#allocation5], 128
    $region29: #{tpu_custom_call.1} parent=1 // pred_fallthru
      _
    %74 = vsyncpa [#allocation4], 1
    %75 = vsyncpa [#allocation5], 1
    %76 = vsyncpa [#allocation6], 1

</llo_original>
